<compile_context>
chip_gen: v7x
topology: tpu7x:2x2x1
jax: 0.10.0
libtpu: 0.0.40
codegen_flags: <defaults>
</compile_context>

<pallas_src>
import functools
import math

import jax
import jax.numpy as jnp
from jax.experimental import pallas as pl
from jax.experimental.pallas import tpu as pltpu


def build_pe(d_model: int, max_len: int, dtype=jnp.float32) -> jnp.ndarray:
    """Sinusoidal positional-encoding buffer, shape (max_len, 1, d_model)."""
    position = jnp.arange(0, max_len, dtype=jnp.float32)[:, None]            # (max_len, 1)
    div_term = jnp.exp(
        jnp.arange(0, d_model, 2, dtype=jnp.float32) * (-math.log(10000.0) / d_model)
    )
    pe = jnp.zeros((max_len, d_model), dtype=jnp.float32)
    pe = pe.at[:, 0::2].set(jnp.sin(position * div_term))
    # Guard odd d_model: cos columns number floor(d_model/2).
    pe = pe.at[:, 1::2].set(jnp.cos(position * div_term[: d_model // 2]))
    return pe[:, None, :].astype(dtype)                                       # (max_len, 1, d_model)


# ----------------------------------------------------------------------------
# Kernels
# ----------------------------------------------------------------------------

def _pe_add_flat_kernel(x_ref, pe_ref, o_ref, *, batch: int):
    """x_ref/o_ref: (tile_s, batch*d_model) dense tiles; pe_ref: (tile_s, d_model)."""
    pe = pe_ref[...]
    if batch > 1:
        # In-register lane replication of pe across the batch segments of the
        # flattened row.  Free filler under the HBM roofline.
        pe = jnp.concatenate([pe] * batch, axis=-1)
    o_ref[...] = (x_ref[...] + pe).astype(o_ref.dtype)


def _pe_add_3d_kernel(x_ref, pe_ref, o_ref):
    """x_ref/o_ref: (tile_s, tile_b, tile_d); pe_ref: (tile_s, tile_d) dense 2-D."""
    o_ref[...] = (x_ref[...] + pe_ref[...][:, None, :]).astype(o_ref.dtype)


# ----------------------------------------------------------------------------
# Tiling / VMEM planning
# ----------------------------------------------------------------------------

def _vmem_plan():
    """Returns (tile_budget_bytes, vmem_limit_bytes, num_tensorcores)."""
    cap = 128 << 20
    try:
        cap = int(pltpu.get_tpu_info().vmem_capacity_bytes)
    except Exception:
        pass  # conservative fallback below
    if cap <= (65 << 20):
        # v7x-like: 64 MiB physical VMEM per TC, 2 TCs per chip.  Keep the
        # double-buffered blocks to ~24 MiB and leave headroom for compiler
        # scratch under a 32 MiB scoped limit.  2-4 MiB blocks already sit
        # within ~1-2% of the HBM roofline.
        return 24 << 20, min(32 << 20, cap), 2
    # v5e / v6e: 128 MiB VMEM, single TensorCore.
    return 56 << 20, min(64 << 20, cap), 1


def _choose_tile_s_flat(seq, flat_f, d_model, itemsize, tile_budget, num_tc):
    """Seq-tile for the flattened (seq, batch*d_model) path."""
    if seq < 8:
        return seq  # single full-extent block; pe gets sliced to seq rows.
    # Real double-buffered footprint per seq row: 2 * (x + out + pe).
    per_row = 2 * (2 * flat_f + d_model) * itemsize
    tile_s = tile_budget // max(per_row, 1)
    # ~4 MiB x blocks already saturate HBM on every generation.
    tile_s = min(tile_s, max(8, (4 << 20) // max(flat_f * itemsize, 1)))
    tile_s = max(8, (tile_s // 8) * 8)          # mandatory sublane multiple of 8
    tile_s = min(tile_s, (seq // 8) * 8)        # never exceed the array
    # v7x megacore: both TCs need work; for large inputs aim for >= ~4 steps
    # per TC so the pipeline hides prologue/epilogue DMA.  No forced split on
    # v5e/v6e (single TC -> the extra grid step would be pure overhead).
    if num_tc > 1 and seq >= 16:
        total_bytes = seq * flat_f * itemsize
        want_steps = 8 if total_bytes >= (32 << 20) else 2
        want_steps = max(1, min(want_steps, seq // 8))
        max_tile = max(8, ((seq // want_steps) // 8) * 8)
        tile_s = min(tile_s, max_tile)
    return max(8, tile_s)


def _choose_tiles_3d(seq, batch, d_model, itemsize, tile_budget):
    """(tile_s, tile_b, tile_d) for the 3-D path (large batch and/or huge rows)."""
    tile_s = seq if seq < 8 else 8
    tile_b, tile_d = batch, d_model

    def footprint(ts, tb, td):
        # double-buffered x + out blocks plus the dense 2-D pe block
        return 2 * (2 * ts * tb * td + ts * td) * itemsize

    # Shrink batch first (multiples of 8), then d_model (multiples of 128).
    while footprint(tile_s, tile_b, tile_d) > tile_budget and tile_b > 8:
        tile_b = max(8, ((tile_b // 2) // 8) * 8)
    while footprint(tile_s, tile_b, tile_d) > tile_budget and tile_d > 128:
        tile_d = max(128, ((tile_d // 2) // 128) * 128)
    # Grow the seq tile while x blocks stay <= ~4 MiB and within budget.
    if seq >= 8:
        while (2 * tile_s <= (seq // 8) * 8
               and footprint(2 * tile_s, tile_b, tile_d) <= tile_budget
               and 2 * tile_s * tile_b * tile_d * itemsize <= (4 << 20)):
            tile_s *= 2
    return tile_s, tile_b, tile_d


# ----------------------------------------------------------------------------
# Forward wrapper
# ----------------------------------------------------------------------------

def positional_encoding_forward(x: jnp.ndarray, pe: jnp.ndarray) -> jnp.ndarray:
    """x: (seq, batch, d_model); pe: (max_len, 1, d_model) or (max_len, d_model).

    Returns x + pe[:seq] (broadcast over batch), same shape/dtype as x.
    """
    seq, batch, d_model = x.shape
    max_len = pe.shape[0]
    assert seq <= max_len, "sequence longer than positional-encoding buffer"

    itemsize = jnp.dtype(x.dtype).itemsize
    # Dense 2-D pe, dtype-matched to x (one-time cast; see dtype note above).
    pe2 = pe.reshape(max_len, d_model).astype(x.dtype)

    tile_budget, vmem_limit, num_tc = _vmem_plan()

    # How many rows pack into one 32-bit sublane: 8 for f32, 16 for bf16, ...
    sublane_pack = max(8, 32 // itemsize)
    flat_f = batch * d_model
    min_ts = seq if seq < 8 else 8
    flat_min_footprint = 2 * min_ts * (2 * flat_f + d_model) * itemsize
    use_flat = (batch < sublane_pack) and (flat_min_footprint <= tile_budget)

    compiler = functools.partial(pltpu.CompilerParams, vmem_limit_bytes=vmem_limit)

    if use_flat:
        # --- flattened path: (seq, batch*d_model), dense sublanes & lanes ----
        tile_s = _choose_tile_s_flat(seq, flat_f, d_model, itemsize,
                                     tile_budget, num_tc)
        # Full pe buffer unless tile_s is not a sublane multiple (only when
        # seq < 8), in which case slice so every block equals the full extent.
        pe_in = pe2 if tile_s % 8 == 0 else pe2[:seq]

        x2 = x.reshape(seq, flat_f)  # free contiguous reshape
        # NOTE: if flat_f is not a multiple of 128 (tiny d_model) the stores
        # are lane-masked; irrelevant for typical d_model >= 512.
        out2 = pl.pallas_call(
            functools.partial(_pe_add_flat_kernel, batch=batch),
            out_shape=jax.ShapeDtypeStruct((seq, flat_f), x.dtype),
            grid_spec=pltpu.PrefetchScalarGridSpec(
                num_scalar_prefetch=0,
                grid=(pl.cdiv(seq, tile_s),),
                in_specs=[
                    pl.BlockSpec((tile_s, flat_f), lambda i: (i, 0)),
                    pl.BlockSpec((tile_s, d_model), lambda i: (i, 0)),
                ],
                out_specs=pl.BlockSpec((tile_s, flat_f), lambda i: (i, 0)),
            ),
            compiler_params=compiler(dimension_semantics=("parallel",)),
        )(x2, pe_in)
        return out2.reshape(seq, batch, d_model)

    # --- 3-D path: large batch (dense sublanes already) or huge rows ---------
    tile_s, tile_b, tile_d = _choose_tiles_3d(seq, batch, d_model, itemsize,
                                              tile_budget)
    pe_in = pe2 if tile_s % 8 == 0 else pe2[:seq]

    return pl.pallas_call(
        _pe_add_3d_kernel,
        out_shape=jax.ShapeDtypeStruct((seq, batch, d_model), x.dtype),
        grid_spec=pltpu.PrefetchScalarGridSpec(
            num_scalar_prefetch=0,
            grid=(pl.cdiv(seq, tile_s), pl.cdiv(batch, tile_b),
                  pl.cdiv(d_model, tile_d)),
            in_specs=[
                pl.BlockSpec((tile_s, tile_b, tile_d), lambda i, b, j: (i, b, j)),
                pl.BlockSpec((tile_s, tile_d), lambda i, b, j: (i, j)),
            ],
            out_specs=pl.BlockSpec((tile_s, tile_b, tile_d),
                                   lambda i, b, j: (i, b, j)),
        ),
        compiler_params=compiler(
            dimension_semantics=("parallel", "parallel", "parallel")),
    )(x, pe_in)


if __name__ == "__main__":
    d_model = 32
    max_len = 16
    seq = 8
    batch = 2

    key = jax.random.PRNGKey(0)
    x = jax.random.normal(key, (seq, batch, d_model), dtype=jnp.float32)

    pe = build_pe(d_model, max_len, dtype=x.dtype)

    out = positional_encoding_forward(x, pe)
    out = jax.block_until_ready(out)

    # Reference check in plain JAX (same math as the PyTorch forward).
    ref = x + pe[:seq]
    assert out.shape == (seq, batch, d_model)
    assert jnp.allclose(out, ref, atol=1e-6), "mismatch vs. reference"

    print("KERNEL_OK")
</pallas_src>

<mosaic_0001>
module attributes {stable_mosaic.version = 11 : i64} {
  func.func @_pe_add_flat_kernel(%arg0: i32, %arg1: memref<8x64xf32, #tpu.memory_space<vmem>>, %arg2: memref<8x32xf32, #tpu.memory_space<vmem>>, %arg3: memref<8x64xf32, #tpu.memory_space<vmem>>) attributes {dimension_semantics = [#tpu.dimension_semantics<parallel>], iteration_bounds = array<i64: 1>, scalar_prefetch = 0 : i64, scratch_operands = 0 : i64, tpu.core_type = #tpu.core_type<tc>, window_params = [{transform_indices = @transform_0, window_bounds = array<i64: 8, 64>}, {transform_indices = @transform_1, window_bounds = array<i64: 8, 32>}, {transform_indices = @transform_2, window_bounds = array<i64: 8, 64>}]} {
    %c0 = arith.constant 0 : index
    %c0_0 = arith.constant 0 : index
    %0 = vector.load %arg2[%c0, %c0_0] : memref<8x32xf32, #tpu.memory_space<vmem>>, vector<8x32xf32>
    %1 = tpu.concatenate %0, %0 in 1 : vector<8x32xf32>, vector<8x32xf32> -> vector<8x64xf32>
    %c0_1 = arith.constant 0 : index
    %c0_2 = arith.constant 0 : index
    %2 = vector.load %arg1[%c0_1, %c0_2] : memref<8x64xf32, #tpu.memory_space<vmem>>, vector<8x64xf32>
    %3 = arith.addf %2, %1 : vector<8x64xf32>
    %c0_3 = arith.constant 0 : index
    %c0_4 = arith.constant 0 : index
    %4 = vector.load %arg3[%c0_3, %c0_4] : memref<8x64xf32, #tpu.memory_space<vmem>>, vector<8x64xf32>
    tpu.vector_store %arg3[%c0_3, %c0_4], %3 {strides = array<i32>} : memref<8x64xf32, #tpu.memory_space<vmem>>, vector<8x64xf32>,
    return
  }
  func.func @transform_0(%arg0: i32) -> (i32, i32) {
    %c0_i32 = arith.constant 0 : i32
    %c0_i32_0 = arith.constant 0 : i32
    return %arg0, %c0_i32 : i32, i32
  }
  func.func @transform_1(%arg0: i32) -> (i32, i32) {
    %c0_i32 = arith.constant 0 : i32
    %c0_i32_0 = arith.constant 0 : i32
    return %arg0, %c0_i32 : i32, i32
  }
  func.func @transform_2(%arg0: i32) -> (i32, i32) {
    %c0_i32 = arith.constant 0 : i32
    %c0_i32_0 = arith.constant 0 : i32
    return %arg0, %c0_i32 : i32, i32
  }
}

</mosaic_0001>

<llo_original>
// kernel: tpu_custom_call.1
$region0: #{tpu_custom_call.1}
  #allocation0 [shape = 'u32[]', space=smem, size = 0x4, offset = 0x4, fixed_abs, tag = 'smem constant byte address 0x4 - core index']
  #allocation1 [shape = 'u32[144,128]{1,0:T(1,128)}', space=vmem, size = 0x12000, scoped, tag = 'internal scratch']
  %s0 = inlined_call_operand.hbm [shape: f32[8,64], index: 0, kind: input, shape index: {}]
  %s1 = inlined_call_operand.hbm [shape: f32[16,32], index: 1, kind: input, shape index: {}]
  %s2 = inlined_call_operand.hbm [shape: f32[8,64], index: 2, kind: output, shape index: {}]
  %s3 = sld [smem:[#allocation0]]
  $region26: #{tpu_custom_call.1} parent=0
    _
  %s5 = ssub.s32 1, %s3
  %s6 = scalar_select 0, %s5, %s3
  $region1: #{tpu_custom_call.1} parent=0
    #allocation2 [shape = 'u8[4096]{0}', space=vmem, size = 0x1000, scoped, tag = 'input window, operand 0, single buffered']
    #allocation3 [shape = 's32[1]{0}', space=sflag, size = 0x4, scoped, tag = 'scoped memory for tpu_custom_call.1']
    #allocation4 [shape = 's32[1]{0}', space=sflag, size = 0x4, scoped, tag = 'scoped memory for tpu_custom_call.1']
    #allocation5 [shape = 'u8[4096]{0}', space=vmem, size = 0x1000, scoped, tag = 'input window, operand 1, single buffered']
    #allocation6 [shape = 's32[1]{0}', space=sflag, size = 0x4, scoped, tag = 'scoped memory for tpu_custom_call.1']
    #allocation7 [shape = 'u8[4096]{0}', space=vmem, size = 0x1000, scoped, tag = 'output window, operand 0, single buffered']
    %7 = vsyncpa [#allocation3], 0
    %8 = vsyncpa [#allocation6], 0
    %9 = vsyncpa [#allocation4], 0
    // Predicated region
    $region2: #{tpu_custom_call.1} parent=1 // pred_check
      _
    $region3: #{tpu_custom_call.1} parent=1 // pred_check_branch
      %11 = sbr.rel (0) target = $region5
    $region4: #{tpu_custom_call.1} parent=1 // pred_region
      %s13 = ssub.s32 128, 128
      %14 = vsyncadd [#allocation3], %s13
      %s16 = sshll.u32 [#allocation2], 4
      %s17 = int_to_ptr.vmem [resolvable:$true] %s16
      %19 = dma.hbm_to_vmem [thread:$0]  %s0, 128, %s17, [#allocation3]
    $region5: #{tpu_custom_call.1} parent=1 // pred_fallthru
      _
    // Predicated region
    $region6: #{tpu_custom_call.1} parent=1 // pred_check
      _
    $region7: #{tpu_custom_call.1} parent=1 // pred_check_branch
      %21 = sbr.rel (0) target = $region9
    $region8: #{tpu_custom_call.1} parent=1 // pred_region
      %s23 = ssub.s32 128, 128
      %24 = vsyncadd [#allocation6], %s23
      %s26 = sshll.u32 [#allocation5], 4
      %s27 = int_to_ptr.vmem [resolvable:$true] %s26
      %29 = dma.hbm_to_vmem [thread:$0]  %s1, 128, %s27, [#allocation6]
    $region9: #{tpu_custom_call.1} parent=1 // pred_fallthru
      _
    // Predicated region
    $region10: #{tpu_custom_call.1} parent=1 // pred_check
      _
    $region11: #{tpu_custom_call.1} parent=1 // pred_check_branch
      %31 = sbr.rel (0) target = $region13
    $region12: #{tpu_custom_call.1} parent=1 // pred_region
      %32 = dma.done [#allocation3], 128
    $region13: #{tpu_custom_call.1} parent=1 // pred_fallthru
      _
    // Predicated region
    $region14: #{tpu_custom_call.1} parent=1 // pred_check
      _
    $region15: #{tpu_custom_call.1} parent=1 // pred_check_branch
      %34 = sbr.rel (0) target = $region17
    $region16: #{tpu_custom_call.1} parent=1 // pred_region
      %35 = dma.done [#allocation6], 128
    $region17: #{tpu_custom_call.1} parent=1 // pred_fallthru
      _
    %v36 = vld [vmem:[#allocation5] sm:$0xff]
    %38 = vrot.lane.b32.xlu0 %v36, 32
    %v39 = vpop.permute.xlu0 %38
    %vm41 = vcmask 261120
    %v42 = vsel %vm41, %v36, %v39
    %v43 = vld [vmem:[#allocation2] sm:$0xff]
    %v44 = vadd.f32 %v43, %v42
    %vm45 = vcmask 523264
    %46 = vst.msk [vmem:[#allocation7] sm:$0xff] %vm45, %v44
    // Predicated region
    $region18: #{tpu_custom_call.1} parent=1 // pred_check
      _
    $region19: #{tpu_custom_call.1} parent=1 // pred_check_branch
      %48 = sbr.rel (0) target = $region21
    $region20: #{tpu_custom_call.1} parent=1 // pred_region
      %s50 = ssub.s32 128, 128
      %51 = vsyncadd [#allocation4], %s50
      %s53 = sshll.u32 [#allocation7], 4
      %s54 = int_to_ptr.vmem [resolvable:$true] %s53
      %56 = dma.vmem_to_hbm [thread:$0]  %s54, 128, %s2, [#allocation4]
    $region21: #{tpu_custom_call.1} parent=1 // pred_fallthru
      _
    // Predicated region
    $region22: #{tpu_custom_call.1} parent=1 // pred_check
      _
    $region23: #{tpu_custom_call.1} parent=1 // pred_check_branch
      %58 = sbr.rel (0) target = $region25
    $region24: #{tpu_custom_call.1} parent=1 // pred_region
      %59 = dma.done [#allocation4], 128
    $region25: #{tpu_custom_call.1} parent=1 // pred_fallthru
      _
    %60 = vsyncpa [#allocation3], 1
    %61 = vsyncpa [#allocation6], 1
    %62 = vsyncpa [#allocation4], 1

</llo_original>
